<compile_context>
chip_gen: v7x
topology: tpu7x:2x2x1
jax: 0.10.0
libtpu: 0.0.40
codegen_flags: <defaults>
</compile_context>

<pallas_src>
import functools
import math

import jax
import jax.numpy as jnp
from jax.experimental import pallas as pl
from jax.experimental.pallas import tpu as pltpu

EPS = 1e-5
NUM_HEADS = 4
NUM_GROUPS = 8
LANE = 128
COMPUTE_DTYPE = jnp.bfloat16   # MXU operand / output dtype (accumulation is fp32)

# Rows of the packed per-channel parameter table (each row padded to Cp lanes).
(_B1, _G1, _BE1, _BT, _BQ, _BK, _BV, _BO,
 _LNG, _LNB, _B2, _G2, _BE2, _NVEC) = range(14)


def _round_up(x, m):
    return (x + m - 1) // m * m


def _nbytes(a):
    return int(a.size) * jnp.dtype(a.dtype).itemsize


# -----------------------------------------------------------------------------
# One-time probe: verify pltpu.roll's rotation direction against jnp.roll so
# the conv2 tap shifts can never be mirrored across jax versions.
# -----------------------------------------------------------------------------
_ROLL_LIKE_JNP = None


def _roll_like_jnp():
    global _ROLL_LIKE_JNP
    if _ROLL_LIKE_JNP is None:
        def k(x_ref, o_ref):
            o_ref[...] = pltpu.roll(x_ref[...], 1, 0)
        x = jnp.tile(jnp.arange(8, dtype=jnp.float32)[:, None], (1, 128))
        y = pl.pallas_call(
            k, out_shape=jax.ShapeDtypeStruct((8, 128), jnp.float32))(x)
        _ROLL_LIKE_JNP = bool(jnp.array_equal(y, jnp.roll(x, 1, 0)))
    return _ROLL_LIKE_JNP


# -----------------------------------------------------------------------------
# Fused kernel: one grid step = one batch element.
# -----------------------------------------------------------------------------
def _make_kernel(H, W, Cout, Cp, roll_like_jnp):
    HW = H * W
    hd = Cout // NUM_HEADS
    scale = 1.0 / math.sqrt(hd)
    cdt = COMPUTE_DTYPE
    f32 = jnp.float32
    taps = [(dh, dw) for dh in range(3) for dw in range(3)]

    def kernel(x_ref, t_ref, ctx_ref, w1_ref, w2_ref, wt_ref, wq_ref, wkv_ref,
               wo_ref, gavg_ref, hmask_ref, cmask_ref, vec_ref, out_ref):
        vec = vec_ref[...]                              # (_NVEC, Cp) f32

        def row(i):                                     # (1, Cp)
            return vec[i:i + 1, :]

        gavg = gavg_ref[...]                            # (Cp, Cp) group-average matrix

        # GroupNorm: one M=1 matmul per statistic, two-pass (centered) variance.
        # Padded lanes rely on padded gammas/betas/weight columns being zero.
        def group_norm(h, gamma, beta):
            mean = jnp.dot(jnp.sum(h, axis=0, keepdims=True), gavg,
                           preferred_element_type=f32)
            hc = h - mean
            var = jnp.dot(jnp.sum(hc * hc, axis=0, keepdims=True), gavg,
                          preferred_element_type=f32)
            return hc * jax.lax.rsqrt(var + EPS) * gamma + beta

        # ---- conv1: one im2col matmul (HW, 9*Cin) @ (9*Cin, Cp) ----
        h = jnp.dot(x_ref[...], w1_ref[...], preferred_element_type=f32) + row(_B1)
        h = group_norm(h, row(_G1), row(_BE1))

        # ---- + time embedding (broadcast over space), SiLU ----
        h = h + jnp.dot(t_ref[...], wt_ref[...], preferred_element_type=f32) + row(_BT)
        h = h * jax.nn.sigmoid(h)

        # ---- cross attention: all heads folded into single matmuls ----
        hs = h[:, :Cout].astype(cdt)                    # real (nonzero) channels
        q = jnp.dot(hs, wq_ref[...],
                    preferred_element_type=f32) + row(_BQ)[:, :Cout]   # (HW, Cout)
        kv = jnp.dot(ctx_ref[...], wkv_ref[...], preferred_element_type=f32)
        k = kv[:, :Cout] + row(_BK)[:, :Cout]           # (S, Cout)
        v = kv[:, Cout:] + row(_BV)[:, :Cout]           # (S, Cout)

        hmask = hmask_ref[...]                          # (NH*S, Cout) head selector
        k_blk = (jnp.concatenate([k] * NUM_HEADS, axis=0) * hmask).astype(cdt)
        v_blk = jnp.concatenate([v] * NUM_HEADS, axis=0) * hmask        # f32
        # scores[:, h*S + s] = <q_head_h, k_head_h[s]>  -- one MXU pass
        scores = jax.lax.dot_general(
            q.astype(cdt), k_blk, (((1,), (1,)), ((), ())),
            preferred_element_type=f32) * scale         # (HW, NH*S)
        # A single per-row max is exact for the per-head softmax (the shift
        # cancels within each head); safe unless cross-head logit spread > ~80.
        e = jnp.exp(scores - jnp.max(scores, axis=-1, keepdims=True))
        denom = jnp.dot(e, hmask, preferred_element_type=f32)   # per-head sums
        acc_u = jnp.dot(e, v_blk, preferred_element_type=f32)   # unnormalised P@V
        heads_out = acc_u * pl.reciprocal(denom, approx=True)   # (HW, Cout)
        attn = jnp.dot(heads_out.astype(cdt), wo_ref[...],
                       preferred_element_type=f32) + row(_BO)   # (HW, Cp)

        # ---- residual + LayerNorm over the real Cout channels ----
        h = h + attn
        lane = jax.lax.broadcasted_iota(jnp.int32, (1, Cp), 1)
        realm = (lane < Cout).astype(f32)
        mu = jnp.sum(h * realm, axis=-1, keepdims=True) * (1.0 / Cout)
        hc = h - mu
        var = jnp.sum(hc * hc * realm, axis=-1, keepdims=True) * (1.0 / Cout)
        h = hc * jax.lax.rsqrt(var + EPS) * row(_LNG) + row(_LNB)

        # ---- conv2: 9 roll-shifted taps (XLU) + border masks, K = Cout ----
        h32 = h[:, :Cout]                               # (HW, Cout) f32
        acc = jnp.zeros((HW, Cp), f32)
        for j, (dh, dw) in enumerate(taps):
            off = (dh - 1) * W + (dw - 1)               # row-major flat offset
            shift = (-off) % HW if roll_like_jnp else off % HW
            tap = h32 if off == 0 else pltpu.roll(h32, shift, 0)
            if not (dh == 1 and dw == 1):
                tap = tap * cmask_ref[j]                # zero wrapped border rows
            acc = acc + jnp.dot(tap.astype(cdt), w2_ref[j],
                                preferred_element_type=f32)
        h2 = group_norm(acc + row(_B2), row(_G2), row(_BE2))
        out_ref[...] = (h2 * jax.nn.sigmoid(h2)).astype(out_ref.dtype)

    return kernel


def _full_spec(arr):
    n = arr.ndim
    return pl.BlockSpec(arr.shape, lambda b, _n=n: (0,) * _n)


# -----------------------------------------------------------------------------
# JAX wrapper (jitted): per-call data prep + pallas_call.
# -----------------------------------------------------------------------------
@functools.partial(jax.jit, static_argnames=("roll_like_jnp",))
def _forward(x, t, context, packed, *, roll_like_jnp):
    B, Cin, H, W = x.shape
    HW = H * W
    Dt = t.shape[1]
    S, Dc = context.shape[1], context.shape[2]
    Cout = packed['wq'].shape[0]
    Cp = packed['wo'].shape[1]
    cdt = COMPUTE_DTYPE
    f32 = jnp.float32
    hd = Cout // NUM_HEADS
    cg = Cout // NUM_GROUPS

    # im2col for conv1 (tiny: HW x 9*Cin) + layout/dtype prep for the inputs
    Kc = packed['w1m'].shape[0]
    x_pad = jnp.pad(jnp.transpose(x, (0, 2, 3, 1)), ((0, 0), (1, 1), (1, 1), (0, 0)))
    cols = [x_pad[:, dh:dh + H, dw:dw + W, :] for dh in range(3) for dw in range(3)]
    x_im2 = jnp.concatenate(cols, axis=-1).reshape(B, HW, 9 * Cin)
    x_im2 = jnp.pad(x_im2, ((0, 0), (0, 0), (0, Kc - 9 * Cin))).astype(cdt)
    t3 = t[:, None, :].astype(cdt)                       # (B, 1, Dt)
    ctx = context.astype(cdt)                            # (B, S, Dc)

    # shape-only constants (constant-folded by XLA, DMA'd once into VMEM)
    ch = jnp.arange(Cp)
    ingrp = ((ch[:, None] // cg == ch[None, :] // cg)
             & (ch[:, None] < Cout) & (ch[None, :] < Cout))
    gavg = ingrp.astype(f32) / float(cg * HW)            # (Cp, Cp)
    hmask = (jnp.arange(NUM_HEADS * S)[:, None] // S
             == jnp.arange(Cout)[None, :] // hd).astype(f32)        # (NH*S, Cout)
    rr = jnp.arange(HW) // W
    cc = jnp.arange(HW) % W
    cmask = jnp.stack(
        [((rr + dh - 1 >= 0) & (rr + dh - 1 < H)
          & (cc + dw - 1 >= 0) & (cc + dw - 1 < W))
         for dh in range(3) for dw in range(3)], axis=0).astype(f32)[:, :, None]

    kernel = _make_kernel(H, W, Cout, Cp, roll_like_jnp)

    weights = (packed['w1m'], packed['w2t'], packed['wt'], packed['wq'],
               packed['wkv'], packed['wo'])
    consts = (gavg, hmask, cmask, packed['vec'])

    # tight (computed) VMEM limit instead of claiming the whole core
    weight_bytes = sum(_nbytes(a) for a in weights + consts)
    per_image_io = (_nbytes(x_im2) + _nbytes(t3) + _nbytes(ctx)) // B + HW * Cp * 2
    vmem_limit = int(min(100 * 2**20,
                         max(8 * 2**20,
                             2 * weight_bytes + 4 * per_image_io
                             + 16 * HW * Cp * 4 + 2 * 2**20)))

    # advisory cost estimate using the real (unpadded) dimensions
    flops = 2 * B * (HW * 9 * Cin * Cout + HW * 9 * Cout * Cout
                     + 2 * HW * Cout * Cout + 2 * S * Dc * Cout
                     + 3 * HW * NUM_HEADS * S * Cout
                     + Dt * Cout + 4 * Cp * Cp)
    transcendentals = B * HW * (2 * Cout + NUM_HEADS * S)
    bytes_accessed = (_nbytes(x_im2) + _nbytes(t3) + _nbytes(ctx)
                      + weight_bytes + B * HW * Cp * 2)

    out = pl.pallas_call(
        kernel,
        out_shape=jax.ShapeDtypeStruct((B, HW, Cp), cdt),
        grid=(B,),
        in_specs=[
            pl.BlockSpec((None, HW, Kc), lambda b: (b, 0, 0)),   # im2col x
            pl.BlockSpec((None, 1, Dt), lambda b: (b, 0, 0)),    # time emb
            pl.BlockSpec((None, S, Dc), lambda b: (b, 0, 0)),    # context
            _full_spec(packed['w1m']),       # (9*Cin_pad, Cp)
            _full_spec(packed['w2t']),       # (9, Cout, Cp)
            _full_spec(packed['wt']),        # (Dt, Cp)
            _full_spec(packed['wq']),        # (Cout, Cout)
            _full_spec(packed['wkv']),       # (Dc, 2*Cout)
            _full_spec(packed['wo']),        # (Cout, Cp)
            _full_spec(gavg),                # (Cp, Cp)
            _full_spec(hmask),               # (NH*S, Cout)
            _full_spec(cmask),               # (9, HW, 1)
            _full_spec(packed['vec']),       # (_NVEC, Cp)
        ],
        out_specs=pl.BlockSpec((None, HW, Cp), lambda b: (b, 0, 0)),
        compiler_params=pltpu.CompilerParams(
            dimension_semantics=("parallel",),
            vmem_limit_bytes=vmem_limit),
        cost_estimate=pl.CostEstimate(flops=int(flops),
                                      transcendentals=int(transcendentals),
                                      bytes_accessed=int(bytes_accessed)),
    )(x_im2, t3, ctx, *weights, *consts)

    # strip channel padding, back to NCHW f32
    y = out[:, :, :Cout].astype(jnp.float32)
    return jnp.transpose(y.reshape(B, H, W, Cout), (0, 3, 1, 2))


def unet_block_forward(x, t, context, packed):
    """UNetBlock forward; `packed` comes from pack_unet_params()."""
    return _forward(x, t, context, packed, roll_like_jnp=_roll_like_jnp())


# -----------------------------------------------------------------------------
# One-time parameter packing (hoisted out of the per-call path).
# -----------------------------------------------------------------------------
def pack_unet_params(params):
    Cout, Cin = params['conv1_w'].shape[0], params['conv1_w'].shape[1]
    assert Cout % NUM_GROUPS == 0 and Cout % NUM_HEADS == 0
    Cp = _round_up(Cout, LANE)
    Kc = _round_up(9 * Cin, 8)
    cdt = COMPUTE_DTYPE
    f32 = jnp.float32

    def pad_last(a, n):
        return jnp.pad(a, [(0, 0)] * (a.ndim - 1) + [(0, n - a.shape[-1])])

    # conv1 as one im2col matmul; rows ordered (kh, kw, cin) to match the
    # wrapper-side patch extraction; output columns zero-padded to Cp.
    w1m = jnp.transpose(params['conv1_w'], (2, 3, 1, 0)).reshape(9 * Cin, Cout)
    w1m = pad_last(jnp.pad(w1m, ((0, Kc - 9 * Cin), (0, 0))), Cp).astype(cdt)
    # conv2 per-tap matrices; K (= Cout) deliberately NOT padded.
    w2t = jnp.transpose(params['conv2_w'], (2, 3, 1, 0)).reshape(9, Cout, Cout)
    w2t = pad_last(w2t, Cp).astype(cdt)

    wt = pad_last(params['time_w'].T, Cp).astype(cdt)            # (Dt, Cp)
    wq = params['q_w'].T.astype(cdt)                             # (Cout, Cout)
    wkv = jnp.concatenate([params['k_w'].T, params['v_w'].T],
                          axis=1).astype(cdt)                    # (Dc, 2*Cout)
    wo = pad_last(params['out_w'].T, Cp).astype(cdt)             # (Cout, Cp)

    # packed per-channel vectors; padded lanes MUST stay exactly zero.
    vec = jnp.stack([
        pad_last(params['conv1_b'], Cp), pad_last(params['gn1_g'], Cp),
        pad_last(params['gn1_b'], Cp), pad_last(params['time_b'], Cp),
        pad_last(params['q_b'], Cp), pad_last(params['k_b'], Cp),
        pad_last(params['v_b'], Cp), pad_last(params['out_b'], Cp),
        pad_last(params['ln_g'], Cp), pad_last(params['ln_b'], Cp),
        pad_last(params['conv2_b'], Cp), pad_last(params['gn2_g'], Cp),
        pad_last(params['gn2_b'], Cp),
    ], axis=0).astype(f32)                                       # (_NVEC, Cp)

    return dict(w1m=w1m, w2t=w2t, wt=wt, wq=wq, wkv=wkv, wo=wo, vec=vec)


# -----------------------------------------------------------------------------
# Pure-JAX fp32 reference (mirrors the PyTorch module semantics)
# -----------------------------------------------------------------------------
def reference_forward(x, t, context, params):
    B, Cin, H, W = x.shape
    Cout = params['conv1_w'].shape[0]

    def conv3x3(xn, w, b):
        y = jax.lax.conv_general_dilated(
            xn, w, (1, 1), 'SAME', dimension_numbers=('NCHW', 'OIHW', 'NCHW'))
        return y + b[None, :, None, None]

    def groupnorm(h, g, bta):
        Bh, C, Hh, Wh = h.shape
        hg = h.reshape(Bh, NUM_GROUPS, C // NUM_GROUPS, Hh, Wh)
        mu = hg.mean(axis=(2, 3, 4), keepdims=True)
        var = hg.var(axis=(2, 3, 4), keepdims=True)
        hg = (hg - mu) / jnp.sqrt(var + EPS)
        return hg.reshape(Bh, C, Hh, Wh) * g[None, :, None, None] + bta[None, :, None, None]

    h = groupnorm(conv3x3(x, params['conv1_w'], params['conv1_b']),
                  params['gn1_g'], params['gn1_b'])
    temb = t @ params['time_w'].T + params['time_b']
    h = h + temb[:, :, None, None]
    h = h * jax.nn.sigmoid(h)

    hr = h.reshape(B, Cout, H * W).transpose(0, 2, 1)
    q = hr @ params['q_w'].T + params['q_b']
    k = context @ params['k_w'].T + params['k_b']
    v = context @ params['v_w'].T + params['v_b']
    hd = Cout // NUM_HEADS
    qh = q.reshape(B, -1, NUM_HEADS, hd).transpose(0, 2, 1, 3)
    kh = k.reshape(B, -1, NUM_HEADS, hd).transpose(0, 2, 1, 3)
    vh = v.reshape(B, -1, NUM_HEADS, hd).transpose(0, 2, 1, 3)
    sc = jnp.einsum('bhqd,bhkd->bhqk', qh, kh) / jnp.sqrt(hd)
    p = jax.nn.softmax(sc, axis=-1)
    o = jnp.einsum('bhqk,bhkd->bhqd', p, vh).transpose(0, 2, 1, 3).reshape(B, -1, Cout)
    attn = o @ params['out_w'].T + params['out_b']
    hr = hr + attn
    mu = hr.mean(-1, keepdims=True)
    var = hr.var(-1, keepdims=True)
    hr = (hr - mu) / jnp.sqrt(var + EPS) * params['ln_g'] + params['ln_b']
    h = hr.transpose(0, 2, 1).reshape(B, Cout, H, W)

    h = groupnorm(conv3x3(h, params['conv2_w'], params['conv2_b']),
                  params['gn2_g'], params['gn2_b'])
    return h * jax.nn.sigmoid(h)


def init_params(key, in_channels, out_channels, time_emb_dim, context_dim):
    ks = jax.random.split(key, 14)
    nrm = lambda k, shape, s=0.05: jax.random.normal(k, shape, jnp.float32) * s
    return dict(
        conv1_w=nrm(ks[0], (out_channels, in_channels, 3, 3)),
        conv1_b=nrm(ks[1], (out_channels,)),
        conv2_w=nrm(ks[2], (out_channels, out_channels, 3, 3)),
        conv2_b=nrm(ks[3], (out_channels,)),
        gn1_g=jnp.ones((out_channels,), jnp.float32),
        gn1_b=jnp.zeros((out_channels,), jnp.float32),
        gn2_g=jnp.ones((out_channels,), jnp.float32),
        gn2_b=jnp.zeros((out_channels,), jnp.float32),
        time_w=nrm(ks[4], (out_channels, time_emb_dim)),
        time_b=nrm(ks[5], (out_channels,)),
        q_w=nrm(ks[6], (out_channels, out_channels), 0.1),
        k_w=nrm(ks[7], (out_channels, context_dim), 0.1),
        v_w=nrm(ks[8], (out_channels, context_dim), 0.1),
        q_b=nrm(ks[9], (out_channels,)),
        k_b=nrm(ks[10], (out_channels,)),
        v_b=nrm(ks[11], (out_channels,)),
        out_w=nrm(ks[12], (out_channels, out_channels), 0.1),
        out_b=nrm(ks[13], (out_channels,)),
        ln_g=jnp.ones((out_channels,), jnp.float32),
        ln_b=jnp.zeros((out_channels,), jnp.float32),
    )


if __name__ == "__main__":
    B, Cin, Cout = 2, 4, 32
    H = W = 16
    time_emb_dim, context_dim, S = 16, 16, 8

    key = jax.random.PRNGKey(0)
    kx, kt, kc, kp = jax.random.split(key, 4)
    x = jax.random.normal(kx, (B, Cin, H, W), jnp.float32)
    t = jax.random.normal(kt, (B, time_emb_dim), jnp.float32)
    context = jax.random.normal(kc, (B, S, context_dim), jnp.float32)
    params = init_params(kp, Cin, Cout, time_emb_dim, context_dim)

    packed = pack_unet_params(params)            # one-time, out of the hot path
    out = jax.block_until_ready(unet_block_forward(x, t, context, packed))
    ref = jax.block_until_ready(reference_forward(x, t, context, params))

    assert out.shape == (B, Cout, H, W)
    assert bool(jnp.all(jnp.isfinite(out)))
    # bf16 MXU operands + bf16 writeback (fp32 accumulation / norms / softmax)
    # give ~1e-2 abs deviation from the fp32 reference.
    max_err = float(jnp.max(jnp.abs(out - ref)))
    assert max_err < 5e-2, f"mismatch vs reference: {max_err}"

    print("KERNEL_OK")
</pallas_src>

<mosaic_0001>
module attributes {stable_mosaic.version = 11 : i64} {
  func.func @k(%arg0: memref<8x128xf32, #tpu.memory_space<vmem>>, %arg1: memref<8x128xf32, #tpu.memory_space<vmem>>) attributes {dimension_semantics = [], scalar_prefetch = 0 : i64, scratch_operands = 0 : i64, tpu.core_type = #tpu.core_type<tc>} {
    %c0 = arith.constant 0 : index
    %c0_0 = arith.constant 0 : index
    %0 = vector.load %arg0[%c0, %c0_0] : memref<8x128xf32, #tpu.memory_space<vmem>>, vector<8x128xf32>
    %c1_i32 = arith.constant 1 : i32
    %1 = tpu.dynamic_rotate %0 by %c1_i32 dim 0 : vector<8x128xf32>, i32 -> vector<8x128xf32>
    %c0_1 = arith.constant 0 : index
    %c0_2 = arith.constant 0 : index
    %2 = vector.load %arg1[%c0_1, %c0_2] : memref<8x128xf32, #tpu.memory_space<vmem>>, vector<8x128xf32>
    tpu.vector_store %arg1[%c0_1, %c0_2], %1 {strides = array<i32>} : memref<8x128xf32, #tpu.memory_space<vmem>>, vector<8x128xf32>,
    return
  }
}

</mosaic_0001>

<llo_original>
// kernel: tpu_custom_call.1
$region0: #{tpu_custom_call.1}
  #allocation0 [shape = 'u32[]', space=smem, size = 0x4, offset = 0x4, fixed_abs, tag = 'smem constant byte address 0x4 - core index']
  #allocation1 [shape = 'u32[144,128]{1,0:T(1,128)}', space=vmem, size = 0x12000, scoped, tag = 'internal scratch']
  %s0 = inlined_call_operand.hbm [shape: f32[8,128], index: 0, kind: input, shape index: {}]
  %s1 = inlined_call_operand.hbm [shape: f32[8,128], index: 1, kind: output, shape index: {}]
  %s2 = sld [smem:[#allocation0]]
  $region18: #{tpu_custom_call.1} parent=0
    _
  %s4 = ssub.s32 1, %s2
  %s5 = scalar_select 0, %s4, %s2
  $region1: #{tpu_custom_call.1} parent=0
    #allocation2 [shape = 'u8[4096]{0}', space=vmem, size = 0x1000, scoped, tag = 'input window, operand 0, single buffered']
    #allocation3 [shape = 's32[1]{0}', space=sflag, size = 0x4, scoped, tag = 'scoped memory for tpu_custom_call.1']
    #allocation4 [shape = 's32[1]{0}', space=sflag, size = 0x4, scoped, tag = 'scoped memory for tpu_custom_call.1']
    #allocation5 [shape = 'u8[4096]{0}', space=vmem, size = 0x1000, scoped, tag = 'output window, operand 0, single buffered']
    %6 = vsyncpa [#allocation3], 0
    %7 = vsyncpa [#allocation4], 0
    // Predicated region
    $region2: #{tpu_custom_call.1} parent=1 // pred_check
      _
    $region3: #{tpu_custom_call.1} parent=1 // pred_check_branch
      %9 = sbr.rel (0) target = $region5
    $region4: #{tpu_custom_call.1} parent=1 // pred_region
      %s11 = ssub.s32 128, 128
      %12 = vsyncadd [#allocation3], %s11
      %s14 = sshll.u32 [#allocation2], 4
      %s15 = int_to_ptr.vmem [resolvable:$true] %s14
      %17 = dma.hbm_to_vmem [thread:$0]  %s0, 128, %s15, [#allocation3]
    $region5: #{tpu_custom_call.1} parent=1 // pred_fallthru
      _
    // Predicated region
    $region6: #{tpu_custom_call.1} parent=1 // pred_check
      _
    $region7: #{tpu_custom_call.1} parent=1 // pred_check_branch
      %19 = sbr.rel (0) target = $region9
    $region8: #{tpu_custom_call.1} parent=1 // pred_region
      %20 = dma.done [#allocation3], 128
    $region9: #{tpu_custom_call.1} parent=1 // pred_fallthru
      _
    %v21 = vld [vmem:[#allocation2] sm:$0xff]
    %v22 = vrot.slane %v21, 7
    %23 = vst [vmem:[#allocation5] sm:$0xff] %v22
    // Predicated region
    $region10: #{tpu_custom_call.1} parent=1 // pred_check
      _
    $region11: #{tpu_custom_call.1} parent=1 // pred_check_branch
      %25 = sbr.rel (0) target = $region13
    $region12: #{tpu_custom_call.1} parent=1 // pred_region
      %s27 = ssub.s32 128, 128
      %28 = vsyncadd [#allocation4], %s27
      %s30 = sshll.u32 [#allocation5], 4
      %s31 = int_to_ptr.vmem [resolvable:$true] %s30
      %33 = dma.vmem_to_hbm [thread:$0]  %s31, 128, %s1, [#allocation4]
    $region13: #{tpu_custom_call.1} parent=1 // pred_fallthru
      _
    // Predicated region
    $region14: #{tpu_custom_call.1} parent=1 // pred_check
      _
    $region15: #{tpu_custom_call.1} parent=1 // pred_check_branch
      %35 = sbr.rel (0) target = $region17
    $region16: #{tpu_custom_call.1} parent=1 // pred_region
      %36 = dma.done [#allocation4], 128
    $region17: #{tpu_custom_call.1} parent=1 // pred_fallthru
      _
    %37 = vsyncpa [#allocation3], 1
    %38 = vsyncpa [#allocation4], 1

</llo_original>
